<compile_context>
chip_gen: v5e
topology: v5e:2x2
jax: 0.10.0
libtpu: 0.0.40
codegen_flags: <defaults>
</compile_context>

<pallas_src>
import jax
import jax.numpy as jnp
from jax.experimental import pallas as pl
from jax.experimental.pallas import tpu as pltpu


# ----------------------------------------------------------------------------
# Single fused kernel: backbone (1x1 conv + ReLU + GAP) -> fusion -> classifier
# ----------------------------------------------------------------------------
def fused_kernel(x_ref, wbb_ref, bbb_ref, wfu_ref, bfu_ref,
                 wcls_ref, bcls_ref, pool_ref, o_ref):
    # x_ref   : (C, BN, HW)   channel-major, HW on the lane axis (full tiles)
    # wbb_ref : (D, C)        1x1-conv weight (out, in)
    # bbb_ref : (D, 1)        conv bias (column -> broadcasts over lanes)
    # wfu_ref : (D, n_hidden), bfu_ref : (1, n_hidden)
    # wcls_ref: (n_hidden, K), bcls_ref: (1, K)
    # pool_ref: (B, BN)       per-bag mean-over-instances pooling matrix
    # o_ref   : (B, K)
    C, BN, HW = x_ref.shape
    D = wbb_ref.shape[0]

    # ---- backbone: batched 1x1 conv as C VPU FMAs + ReLU + GAP ---------------
    # acc[bn, d, hw] = sum_c wbb[d, c] * x[c, bn, hw]
    def chan_term(c):
        w_c = wbb_ref[:, c:c + 1]            # (D, 1), hoisted once per channel
        return w_c[None, :, :] * x_ref[c][:, None, :]   # (BN, D, HW)

    acc = chan_term(0)
    for c in range(1, C):                    # C == 3, static unroll (VPU, no MXU)
        acc = acc + chan_term(c)

    bias = bbb_ref[...][None, :, :]          # (1, D, 1)
    feat = jnp.maximum(acc + bias, 0.0)      # ReLU, (BN, D, HW)
    feats = jnp.mean(feat, axis=-1)          # GAP over lanes -> (BN, D)

    # ---- fusion: Linear + ReLU, then per-bag mean via small pooling matmul ---
    h = jnp.dot(feats, wfu_ref[...], preferred_element_type=jnp.float32)
    h = jnp.maximum(h + bfu_ref[...], 0.0)                              # (BN, n_hidden)
    fused = jnp.dot(pool_ref[...], h, preferred_element_type=jnp.float32)  # (B, n_hidden)

    # ---- classifier ----------------------------------------------------------
    o_ref[...] = (
        jnp.dot(fused, wcls_ref[...], preferred_element_type=jnp.float32)
        + bcls_ref[...]
    )


# ----------------------------------------------------------------------------
# Forward wrapper (layout glue only)
# ----------------------------------------------------------------------------
def multiple_instance_baseline_forward(image, params):
    """image: (B, N, 3, H, W) float32."""
    B, N, C, H, W = image.shape
    BN, HW = B * N, H * W
    # Channel-major (C, BN, HW): every channel slab is an (8,128)-aligned,
    # zero-padding tile inside the kernel.
    x = jnp.transpose(image, (2, 0, 1, 3, 4)).reshape(C, BN, HW)
    # Static (B, BN) pooling matrix: mean over each bag's N instances.
    pool = jnp.repeat(jnp.eye(B, dtype=jnp.float32), N, axis=1) / N
    n_classes = params["w_cls"].shape[1]

    vmem = lambda: pl.BlockSpec(memory_space=pltpu.MemorySpace.VMEM)
    return pl.pallas_call(
        fused_kernel,
        out_shape=jax.ShapeDtypeStruct((B, n_classes), jnp.float32),
        in_specs=[vmem() for _ in range(8)],
        out_specs=vmem(),
    )(x, params["w_bb"], params["b_bb"], params["w_fu"], params["b_fu"],
      params["w_cls"], params["b_cls"], pool)


def init_params(key, c_in=3, cnn_dim=32, n_hidden=32, n_classes=10):
    k1, k2, k3, k4, k5, k6 = jax.random.split(key, 6)
    return {
        "w_bb": jax.random.normal(k1, (cnn_dim, c_in), jnp.float32) * 0.1,   # (D, C)
        "b_bb": jax.random.normal(k4, (cnn_dim, 1), jnp.float32) * 0.1,      # (D, 1)
        "w_fu": jax.random.normal(k2, (cnn_dim, n_hidden), jnp.float32) * 0.1,
        "b_fu": jax.random.normal(k5, (1, n_hidden), jnp.float32) * 0.1,
        "w_cls": jax.random.normal(k3, (n_hidden, n_classes), jnp.float32) * 0.1,
        "b_cls": jax.random.normal(k6, (1, n_classes), jnp.float32) * 0.1,
    }


if __name__ == "__main__":
    key = jax.random.PRNGKey(0)
    kp, kx = jax.random.split(key)

    B, N, C, H, W = 2, 4, 3, 16, 16
    cnn_dim, n_hidden, n_classes = 32, 32, 10

    params = init_params(kp, c_in=C, cnn_dim=cnn_dim,
                         n_hidden=n_hidden, n_classes=n_classes)
    image = jax.random.normal(kx, (B, N, C, H, W), jnp.float32)

    logits = multiple_instance_baseline_forward(image, params)
    logits = jax.block_until_ready(logits)

    # Pure-JAX reference of the same synthetic forward.
    x_ref = image.reshape(B * N, C, H * W)                               # (BN, C, HW)
    conv = jnp.einsum("dc,icp->idp", params["w_bb"], x_ref) + params["b_bb"][None, :, :]
    feats_ref = jnp.mean(jnp.maximum(conv, 0.0), axis=-1)                # (BN, D)
    h_ref = jnp.maximum(feats_ref @ params["w_fu"] + params["b_fu"], 0.0)
    fused_ref = jnp.mean(h_ref.reshape(B, N, n_hidden), axis=1)          # (B, n_hidden)
    logits_ref = fused_ref @ params["w_cls"] + params["b_cls"]           # (B, K)

    assert logits.shape == (B, n_classes)
    assert jnp.allclose(logits, logits_ref, atol=1e-4, rtol=1e-4)

    print("KERNEL_OK")
</pallas_src>

<mosaic_0001>
module attributes {stable_mosaic.version = 11 : i64} {
  func.func @fused_kernel(%arg0: memref<3x8x256xf32, #tpu.memory_space<vmem>>, %arg1: memref<32x3xf32, #tpu.memory_space<vmem>>, %arg2: memref<32x1xf32, #tpu.memory_space<vmem>>, %arg3: memref<32x32xf32, #tpu.memory_space<vmem>>, %arg4: memref<1x32xf32, #tpu.memory_space<vmem>>, %arg5: memref<32x10xf32, #tpu.memory_space<vmem>>, %arg6: memref<1x10xf32, #tpu.memory_space<vmem>>, %arg7: memref<2x8xf32, #tpu.memory_space<vmem>>, %arg8: memref<2x10xf32, #tpu.memory_space<vmem>>) attributes {dimension_semantics = [], scalar_prefetch = 0 : i64, scratch_operands = 0 : i64, tpu.core_type = #tpu.core_type<tc>} {
    %c0 = arith.constant 0 : index
    %c0_0 = arith.constant 0 : index
    %0 = vector.load %arg1[%c0, %c0_0] : memref<32x3xf32, #tpu.memory_space<vmem>>, vector<32x1xf32>
    %1 = vector.shape_cast %0 : vector<32x1xf32> to vector<1x32x1xf32>
    %c0_1 = arith.constant 0 : index
    %c0_2 = arith.constant 0 : index
    %c0_3 = arith.constant 0 : index
    %2 = vector.load %arg0[%c0_1, %c0_2, %c0_3] : memref<3x8x256xf32, #tpu.memory_space<vmem>>, vector<1x8x256xf32>
    %3 = vector.shape_cast %2 : vector<1x8x256xf32> to vector<8x256xf32>
    %4 = vector.shape_cast %3 : vector<8x256xf32> to vector<8x1x256xf32>
    %5 = vector.broadcast %1 : vector<1x32x1xf32> to vector<8x32x256xf32>
    %6 = vector.broadcast %4 : vector<8x1x256xf32> to vector<8x32x256xf32>
    %7 = arith.mulf %5, %6 : vector<8x32x256xf32>
    %c0_4 = arith.constant 0 : index
    %c1 = arith.constant 1 : index
    %8 = vector.load %arg1[%c0_4, %c1] : memref<32x3xf32, #tpu.memory_space<vmem>>, vector<32x1xf32>
    %9 = vector.shape_cast %8 : vector<32x1xf32> to vector<1x32x1xf32>
    %c1_5 = arith.constant 1 : index
    %c0_6 = arith.constant 0 : index
    %c0_7 = arith.constant 0 : index
    %10 = vector.load %arg0[%c1_5, %c0_6, %c0_7] : memref<3x8x256xf32, #tpu.memory_space<vmem>>, vector<1x8x256xf32>
    %11 = vector.shape_cast %10 : vector<1x8x256xf32> to vector<8x256xf32>
    %12 = vector.shape_cast %11 : vector<8x256xf32> to vector<8x1x256xf32>
    %13 = vector.broadcast %9 : vector<1x32x1xf32> to vector<8x32x256xf32>
    %14 = vector.broadcast %12 : vector<8x1x256xf32> to vector<8x32x256xf32>
    %15 = arith.mulf %13, %14 : vector<8x32x256xf32>
    %16 = arith.addf %7, %15 : vector<8x32x256xf32>
    %c0_8 = arith.constant 0 : index
    %c2 = arith.constant 2 : index
    %17 = vector.load %arg1[%c0_8, %c2] : memref<32x3xf32, #tpu.memory_space<vmem>>, vector<32x1xf32>
    %18 = vector.shape_cast %17 : vector<32x1xf32> to vector<1x32x1xf32>
    %c2_9 = arith.constant 2 : index
    %c0_10 = arith.constant 0 : index
    %c0_11 = arith.constant 0 : index
    %19 = vector.load %arg0[%c2_9, %c0_10, %c0_11] : memref<3x8x256xf32, #tpu.memory_space<vmem>>, vector<1x8x256xf32>
    %20 = vector.shape_cast %19 : vector<1x8x256xf32> to vector<8x256xf32>
    %21 = vector.shape_cast %20 : vector<8x256xf32> to vector<8x1x256xf32>
    %22 = vector.broadcast %18 : vector<1x32x1xf32> to vector<8x32x256xf32>
    %23 = vector.broadcast %21 : vector<8x1x256xf32> to vector<8x32x256xf32>
    %24 = arith.mulf %22, %23 : vector<8x32x256xf32>
    %25 = arith.addf %16, %24 : vector<8x32x256xf32>
    %c0_12 = arith.constant 0 : index
    %c0_13 = arith.constant 0 : index
    %26 = vector.load %arg2[%c0_12, %c0_13] : memref<32x1xf32, #tpu.memory_space<vmem>>, vector<32x1xf32>
    %27 = vector.shape_cast %26 : vector<32x1xf32> to vector<1x32x1xf32>
    %28 = vector.broadcast %27 : vector<1x32x1xf32> to vector<8x32x256xf32>
    %29 = arith.addf %25, %28 : vector<8x32x256xf32>
    %cst = arith.constant 0.000000e+00 : f32
    %30 = vector.broadcast %cst : f32 to vector<8x32x256xf32>
    %31 = arith.maximumf %29, %30 : vector<8x32x256xf32>
    %cst_14 = arith.constant dense<0.000000e+00> : vector<8x32xf32>
    %32 = vector.multi_reduction <add>, %31, %cst_14 [2] : vector<8x32x256xf32> to vector<8x32xf32>
    %cst_15 = arith.constant 2.560000e+02 : f32
    %33 = vector.broadcast %cst_15 : f32 to vector<8x32xf32>
    %34 = arith.divf %32, %33 : vector<8x32xf32>
    %c0_16 = arith.constant 0 : index
    %c0_17 = arith.constant 0 : index
    %35 = vector.load %arg3[%c0_16, %c0_17] : memref<32x32xf32, #tpu.memory_space<vmem>>, vector<32x32xf32>
    %cst_18 = arith.constant dense<0.000000e+00> : vector<8x32xf32>
    %36 = tpu.matmul %34, %35, %cst_18 {dimension_numbers = #tpu.dot_dimension_numbers<[1], [0], [0], [1], [0, 0, 1, 1], [], []>} : vector<8x32xf32>, vector<32x32xf32>, vector<8x32xf32> -> vector<8x32xf32>
    %c0_19 = arith.constant 0 : index
    %c0_20 = arith.constant 0 : index
    %37 = vector.load %arg4[%c0_19, %c0_20] : memref<1x32xf32, #tpu.memory_space<vmem>>, vector<1x32xf32>
    %38 = vector.broadcast %37 : vector<1x32xf32> to vector<8x32xf32>
    %39 = arith.addf %36, %38 : vector<8x32xf32>
    %cst_21 = arith.constant 0.000000e+00 : f32
    %40 = vector.broadcast %cst_21 : f32 to vector<8x32xf32>
    %41 = arith.maximumf %39, %40 : vector<8x32xf32>
    %c0_22 = arith.constant 0 : index
    %c0_23 = arith.constant 0 : index
    %42 = vector.load %arg7[%c0_22, %c0_23] : memref<2x8xf32, #tpu.memory_space<vmem>>, vector<2x8xf32>
    %cst_24 = arith.constant dense<0.000000e+00> : vector<2x32xf32>
    %43 = tpu.matmul %42, %41, %cst_24 {dimension_numbers = #tpu.dot_dimension_numbers<[1], [0], [0], [1], [0, 0, 1, 1], [], []>} : vector<2x8xf32>, vector<8x32xf32>, vector<2x32xf32> -> vector<2x32xf32>
    %c0_25 = arith.constant 0 : index
    %c0_26 = arith.constant 0 : index
    %44 = vector.load %arg5[%c0_25, %c0_26] : memref<32x10xf32, #tpu.memory_space<vmem>>, vector<32x10xf32>
    %cst_27 = arith.constant dense<0.000000e+00> : vector<2x10xf32>
    %45 = tpu.matmul %43, %44, %cst_27 {dimension_numbers = #tpu.dot_dimension_numbers<[1], [0], [0], [1], [0, 0, 1, 1], [], []>} : vector<2x32xf32>, vector<32x10xf32>, vector<2x10xf32> -> vector<2x10xf32>
    %c0_28 = arith.constant 0 : index
    %c0_29 = arith.constant 0 : index
    %46 = vector.load %arg6[%c0_28, %c0_29] : memref<1x10xf32, #tpu.memory_space<vmem>>, vector<1x10xf32>
    %47 = vector.broadcast %46 : vector<1x10xf32> to vector<2x10xf32>
    %48 = arith.addf %45, %47 : vector<2x10xf32>
    %c0_30 = arith.constant 0 : index
    %c0_31 = arith.constant 0 : index
    %49 = vector.load %arg8[%c0_30, %c0_31] : memref<2x10xf32, #tpu.memory_space<vmem>>, vector<2x10xf32>
    tpu.vector_store %arg8[%c0_30, %c0_31], %48 {strides = array<i32>} : memref<2x10xf32, #tpu.memory_space<vmem>>, vector<2x10xf32>,
    return
  }
}

</mosaic_0001>

<llo_original>
// kernel: tpu_custom_call.1
$region0: #{tpu_custom_call.1}
  #allocation0 [shape = 'u32[]', space=smem, size = 0x4, offset = 0x4, fixed_abs, tag = 'smem constant byte address 0x4 - core index']
  #allocation1 [shape = 'u32[72,128]{1,0:T(1,128)}', space=vmem, size = 0x9000, scoped, tag = 'internal scratch']
  %s0 = inlined_call_operand.vmem [shape: f32[3,8,256], index: 0, kind: input, shape index: {}]
  %s1 = inlined_call_operand.vmem [shape: f32[32,3], index: 1, kind: input, shape index: {}]
  %s2 = inlined_call_operand.vmem [shape: f32[32,1], index: 2, kind: input, shape index: {}]
  %s3 = inlined_call_operand.vmem [shape: f32[32,32], index: 3, kind: input, shape index: {}]
  %s4 = inlined_call_operand.vmem [shape: f32[1,32], index: 4, kind: input, shape index: {}]
  %s5 = inlined_call_operand.vmem [shape: f32[32,10], index: 5, kind: input, shape index: {}]
  %s6 = inlined_call_operand.vmem [shape: f32[1,10], index: 6, kind: input, shape index: {}]
  %s7 = inlined_call_operand.vmem [shape: f32[2,8], index: 7, kind: input, shape index: {}]
  %s8 = inlined_call_operand.hbm [shape: f32[2,10], index: 8, kind: output, shape index: {}]
  %s9 = sld [smem:[#allocation0]]
  $region42: #{tpu_custom_call.1} parent=0
    _
  %s11 = ssub.s32 1, %s9
  %s12 = scalar_select 0, %s11, %s9
  $region1: #{tpu_custom_call.1} parent=0
    #allocation2 [shape = 'u8[1024]{0}', space=vmem, size = 0x400, scoped, tag = 'output window, operand 0, single buffered']
    #allocation3 [shape = 's32[1]{0}', space=sflag, size = 0x4, scoped, tag = 'scoped memory for tpu_custom_call.1']
    %13 = vsyncpa [#allocation3], 0
    // Predicated region
    $region2: #{tpu_custom_call.1} parent=1 // pred_check
      _
    $region3: #{tpu_custom_call.1} parent=1 // pred_check_branch
      %15 = sbr.rel (0) target = $region5
    $region4: #{tpu_custom_call.1} parent=1 // pred_region
      _
    $region5: #{tpu_custom_call.1} parent=1 // pred_fallthru
      _
    // Predicated region
    $region6: #{tpu_custom_call.1} parent=1 // pred_check
      _
    $region7: #{tpu_custom_call.1} parent=1 // pred_check_branch
      %17 = sbr.rel (0) target = $region9
    $region8: #{tpu_custom_call.1} parent=1 // pred_region
      _
    $region9: #{tpu_custom_call.1} parent=1 // pred_fallthru
      _
    // Predicated region
    $region10: #{tpu_custom_call.1} parent=1 // pred_check
      _
    $region11: #{tpu_custom_call.1} parent=1 // pred_check_branch
      %19 = sbr.rel (0) target = $region13
    $region12: #{tpu_custom_call.1} parent=1 // pred_region
      _
    $region13: #{tpu_custom_call.1} parent=1 // pred_fallthru
      _
    // Predicated region
    $region14: #{tpu_custom_call.1} parent=1 // pred_check
      _
    $region15: #{tpu_custom_call.1} parent=1 // pred_check_branch
      %21 = sbr.rel (0) target = $region17
    $region16: #{tpu_custom_call.1} parent=1 // pred_region
      _
    $region17: #{tpu_custom_call.1} parent=1 // pred_fallthru
      _
    // Predicated region
    $region18: #{tpu_custom_call.1} parent=1 // pred_check
      _
    $region19: #{tpu_custom_call.1} parent=1 // pred_check_branch
      %23 = sbr.rel (0) target = $region21
    $region20: #{tpu_custom_call.1} parent=1 // pred_region
      _
    $region21: #{tpu_custom_call.1} parent=1 // pred_fallthru
      _
    // Predicated region
    $region22: #{tpu_custom_call.1} parent=1 // pred_check
      _
    $region23: #{tpu_custom_call.1} parent=1 // pred_check_branch
      %25 = sbr.rel (0) target = $region25
    $region24: #{tpu_custom_call.1} parent=1 // pred_region
      _
    $region25: #{tpu_custom_call.1} parent=1 // pred_fallthru
      _
    // Predicated region
    $region26: #{tpu_custom_call.1} parent=1 // pred_check
      _
    $region27: #{tpu_custom_call.1} parent=1 // pred_check_branch
      %27 = sbr.rel (0) target = $region29
    $region28: #{tpu_custom_call.1} parent=1 // pred_region
      _
    $region29: #{tpu_custom_call.1} parent=1 // pred_fallthru
      _
    // Predicated region
    $region30: #{tpu_custom_call.1} parent=1 // pred_check
      _
    $region31: #{tpu_custom_call.1} parent=1 // pred_check_branch
      %29 = sbr.rel (0) target = $region33
    $region32: #{tpu_custom_call.1} parent=1 // pred_region
      _
    $region33: #{tpu_custom_call.1} parent=1 // pred_fallthru
      _
    %v30 = vld [vmem:[%s1] sm:$0xff]
    %v31 = vld [vmem:[%s1 + $0x8] sm:$0xff]
    %v32 = vld [vmem:[%s1 + $0x10] sm:$0xff]
    %v33 = vld [vmem:[%s1 + $0x18] sm:$0xff]
    %v34 = vld [vmem:[%s0] sm:$0xff]
    %v35 = vld [vmem:[%s0 + $0x8] sm:$0xff]
    %v38 = vrot.slane %v35, 7
    %vm39 = vcmask 1040384
    %v40 = vsel %vm39, %v34, %v38
    %vm41 = vcmask 1041409
    %v42 = vsel %vm41, %v34, %v38
    %v43 = vrot.slane %v42, 1
    %vm44 = vcmask 1042434
    %v45 = vsel %vm44, %v34, %v38
    %v46 = vrot.slane %v45, 2
    %vm47 = vcmask 1043459
    %v48 = vsel %vm47, %v34, %v38
    %v49 = vrot.slane %v48, 3
    %vm50 = vcmask 1044484
    %v51 = vsel %vm50, %v34, %v38
    %v52 = vrot.slane %v51, 4
    %vm53 = vcmask 1045509
    %v54 = vsel %vm53, %v34, %v38
    %v55 = vrot.slane %v54, 5
    %vm56 = vcmask 1046534
    %v57 = vsel %vm56, %v34, %v38
    %v58 = vrot.slane %v57, 6
    %vm59 = vcmask 1046528
    %v60 = vsel %vm59, %v38, %v34
    %v61 = vrot.slane %v60, 7
    %63 = vset.pattern.permute.xlu0 0
    %64 = vperm.xlu0 %63, %v30
    %v65 = vpop.permute.xlu0 %64
    %68 = vset.pattern.permute.xlu0 0
    %69 = vperm.xlu0 %68, %v31
    %v70 = vpop.permute.xlu0 %69
    %73 = vset.pattern.permute.xlu0 0
    %74 = vperm.xlu0 %73, %v32
    %v75 = vpop.permute.xlu0 %74
    %78 = vset.pattern.permute.xlu0 0
    %79 = vperm.xlu0 %78, %v33
    %v80 = vpop.permute.xlu0 %79
    %v82 = vperm.slane %v40, 0
    %v83 = vperm.slane %v40, 1
    %v84 = vperm.slane %v43, 0
    %v85 = vperm.slane %v43, 1
    %v86 = vperm.slane %v46, 0
    %v87 = vperm.slane %v46, 1
    %v88 = vperm.slane %v49, 0
    %v89 = vperm.slane %v49, 1
    %v90 = vperm.slane %v52, 0
    %v91 = vperm.slane %v52, 1
    %v92 = vperm.slane %v55, 0
    %v93 = vperm.slane %v55, 1
    %v94 = vperm.slane %v58, 0
    %v95 = vperm.slane %v58, 1
    %v96 = vperm.slane %v61, 0
    %v97 = vperm.slane %v61, 1
    %v114 = vmul.f32 %v65, %v82
    %v115 = vmul.f32 %v65, %v83
    %v116 = vmul.f32 %v70, %v82
    %v117 = vmul.f32 %v70, %v83
    %v118 = vmul.f32 %v75, %v82
    %v119 = vmul.f32 %v75, %v83
    %v120 = vmul.f32 %v80, %v82
    %v121 = vmul.f32 %v80, %v83
    %v122 = vmul.f32 %v65, %v84
    %v123 = vmul.f32 %v65, %v85
    %v124 = vmul.f32 %v70, %v84
    %v125 = vmul.f32 %v70, %v85
    %v126 = vmul.f32 %v75, %v84
    %v127 = vmul.f32 %v75, %v85
    %v128 = vmul.f32 %v80, %v84
    %v129 = vmul.f32 %v80, %v85
    %v130 = vmul.f32 %v65, %v86
    %v131 = vmul.f32 %v65, %v87
    %v132 = vmul.f32 %v70, %v86
    %v133 = vmul.f32 %v70, %v87
    %v134 = vmul.f32 %v75, %v86
    %v135 = vmul.f32 %v75, %v87
    %v136 = vmul.f32 %v80, %v86
    %v137 = vmul.f32 %v80, %v87
    %v138 = vmul.f32 %v65, %v88
    %v139 = vmul.f32 %v65, %v89
    %v140 = vmul.f32 %v70, %v88
    %v141 = vmul.f32 %v70, %v89
    %v142 = vmul.f32 %v75, %v88
    %v143 = vmul.f32 %v75, %v89
    %v144 = vmul.f32 %v80, %v88
    %v145 = vmul.f32 %v80, %v89
    %v146 = vmul.f32 %v65, %v90
    %v147 = vmul.f32 %v65, %v91
    %v148 = vmul.f32 %v70, %v90
    %v149 = vmul.f32 %v70, %v91
    %v150 = vmul.f32 %v75, %v90
    %v151 = vmul.f32 %v75, %v91
    %v152 = vmul.f32 %v80, %v90
    %v153 = vmul.f32 %v80, %v91
    %v154 = vmul.f32 %v65, %v92
    %v155 = vmul.f32 %v65, %v93
    %v156 = vmul.f32 %v70, %v92
    %v157 = vmul.f32 %v70, %v93
    %v158 = vmul.f32 %v75, %v92
    %v159 = vmul.f32 %v75, %v93
    %v160 = vmul.f32 %v80, %v92
    %v161 = vmul.f32 %v80, %v93
    %v162 = vmul.f32 %v65, %v94
    %v163 = vmul.f32 %v65, %v95
    %v164 = vmul.f32 %v70, %v94
    %v165 = vmul.f32 %v70, %v95
    %v166 = vmul.f32 %v75, %v94
    %v167 = vmul.f32 %v75, %v95
    %v168 = vmul.f32 %v80, %v94
    %v169 = vmul.f32 %v80, %v95
    %v170 = vmul.f32 %v65, %v96
    %v171 = vmul.f32 %v65, %v97
    %v172 = vmul.f32 %v70, %v96
    %v173 = vmul.f32 %v70, %v97
    %v174 = vmul.f32 %v75, %v96
    %v175 = vmul.f32 %v75, %v97
    %v176 = vmul.f32 %v80, %v96
    %v177 = vmul.f32 %v80, %v97
    %s178 = scalar_lea.vmem %s0, 16
    %v179 = vld [vmem:[%s178] sm:$0xff]
    %v180 = vld [vmem:[%s178 + $0x8] sm:$0xff]
    %v183 = vrot.slane %v180, 7
    %v184 = vsel %vm39, %v179, %v183
    %v185 = vsel %vm41, %v179, %v183
    %v186 = vrot.slane %v185, 1
    %v187 = vsel %vm44, %v179, %v183
    %v188 = vrot.slane %v187, 2
    %v189 = vsel %vm47, %v179, %v183
    %v190 = vrot.slane %v189, 3
    %v191 = vsel %vm50, %v179, %v183
    %v192 = vrot.slane %v191, 4
    %v193 = vsel %vm53, %v179, %v183
    %v194 = vrot.slane %v193, 5
    %v195 = vsel %vm56, %v179, %v183
    %v196 = vrot.slane %v195, 6
    %v197 = vsel %vm59, %v183, %v179
    %v198 = vrot.slane %v197, 7
    %199 = vset.pattern.permute.xlu0 1
    %200 = vperm.xlu0 %199, %v30
    %v201 = vpop.permute.xlu0 %200
    %203 = vset.pattern.permute.xlu0 1
    %204 = vperm.xlu0 %203, %v31
    %v205 = vpop.permute.xlu0 %204
    %207 = vset.pattern.permute.xlu0 1
    %208 = vperm.xlu0 %207, %v32
    %v209 = vpop.permute.xlu0 %208
    %211 = vset.pattern.permute.xlu0 1
    %212 = vperm.xlu0 %211, %v33
    %v213 = vpop.permute.xlu0 %212
    %v215 = vperm.slane %v184, 0
    %v216 = vperm.slane %v184, 1
    %v217 = vperm.slane %v186, 0
    %v218 = vperm.slane %v186, 1
    %v219 = vperm.slane %v188, 0
    %v220 = vperm.slane %v188, 1
    %v221 = vperm.slane %v190, 0
    %v222 = vperm.slane %v190, 1
    %v223 = vperm.slane %v192, 0
    %v224 = vperm.slane %v192, 1
    %v225 = vperm.slane %v194, 0
    %v226 = vperm.slane %v194, 1
    %v227 = vperm.slane %v196, 0
    %v228 = vperm.slane %v196, 1
    %v229 = vperm.slane %v198, 0
    %v230 = vperm.slane %v198, 1
    %v247 = vmul.f32 %v201, %v215
    %v248 = vmul.f32 %v201, %v216
    %v249 = vmul.f32 %v205, %v215
    %v250 = vmul.f32 %v205, %v216
    %v251 = vmul.f32 %v209, %v215
    %v252 = vmul.f32 %v209, %v216
    %v253 = vmul.f32 %v213, %v215
    %v254 = vmul.f32 %v213, %v216
    %v255 = vmul.f32 %v201, %v217
    %v256 = vmul.f32 %v201, %v218
    %v257 = vmul.f32 %v205, %v217
    %v258 = vmul.f32 %v205, %v218
    %v259 = vmul.f32 %v209, %v217
    %v260 = vmul.f32 %v209, %v218
    %v261 = vmul.f32 %v213, %v217
    %v262 = vmul.f32 %v213, %v218
    %v263 = vmul.f32 %v201, %v219
    %v264 = vmul.f32 %v201, %v220
    %v265 = vmul.f32 %v205, %v219
    %v266 = vmul.f32 %v205, %v220
    %v267 = vmul.f32 %v209, %v219
    %v268 = vmul.f32 %v209, %v220
    %v269 = vmul.f32 %v213, %v219
    %v270 = vmul.f32 %v213, %v220
    %v271 = vmul.f32 %v201, %v221
    %v272 = vmul.f32 %v201, %v222
    %v273 = vmul.f32 %v205, %v221
    %v274 = vmul.f32 %v205, %v222
    %v275 = vmul.f32 %v209, %v221
    %v276 = vmul.f32 %v209, %v222
    %v277 = vmul.f32 %v213, %v221
    %v278 = vmul.f32 %v213, %v222
    %v279 = vmul.f32 %v201, %v223
    %v280 = vmul.f32 %v201, %v224
    %v281 = vmul.f32 %v205, %v223
    %v282 = vmul.f32 %v205, %v224
    %v283 = vmul.f32 %v209, %v223
    %v284 = vmul.f32 %v209, %v224
    %v285 = vmul.f32 %v213, %v223
    %v286 = vmul.f32 %v213, %v224
    %v287 = vmul.f32 %v201, %v225
    %v288 = vmul.f32 %v201, %v226
    %v289 = vmul.f32 %v205, %v225
    %v290 = vmul.f32 %v205, %v226
    %v291 = vmul.f32 %v209, %v225
    %v292 = vmul.f32 %v209, %v226
    %v293 = vmul.f32 %v213, %v225
    %v294 = vmul.f32 %v213, %v226
    %v295 = vmul.f32 %v201, %v227
    %v296 = vmul.f32 %v201, %v228
    %v297 = vmul.f32 %v205, %v227
    %v298 = vmul.f32 %v205, %v228
    %v299 = vmul.f32 %v209, %v227
    %v300 = vmul.f32 %v209, %v228
    %v301 = vmul.f32 %v213, %v227
    %v302 = vmul.f32 %v213, %v228
    %v303 = vmul.f32 %v201, %v229
    %v304 = vmul.f32 %v201, %v230
    %v305 = vmul.f32 %v205, %v229
    %v306 = vmul.f32 %v205, %v230
    %v307 = vmul.f32 %v209, %v229
    %v308 = vmul.f32 %v209, %v230
    %v309 = vmul.f32 %v213, %v229
    %v310 = vmul.f32 %v213, %v230
    %v311 = vadd.f32 %v114, %v247
    %v312 = vadd.f32 %v115, %v248
    %v313 = vadd.f32 %v116, %v249
    %v314 = vadd.f32 %v117, %v250
    %v315 = vadd.f32 %v118, %v251
    %v316 = vadd.f32 %v119, %v252
    %v317 = vadd.f32 %v120, %v253
    %v318 = vadd.f32 %v121, %v254
    %v319 = vadd.f32 %v122, %v255
    %v320 = vadd.f32 %v123, %v256
    %v321 = vadd.f32 %v124, %v257
    %v322 = vadd.f32 %v125, %v258
    %v323 = vadd.f32 %v126, %v259
    %v324 = vadd.f32 %v127, %v260
    %v325 = vadd.f32 %v128, %v261
    %v326 = vadd.f32 %v129, %v262
    %v327 = vadd.f32 %v130, %v263
    %v328 = vadd.f32 %v131, %v264
    %v329 = vadd.f32 %v132, %v265
    %v330 = vadd.f32 %v133, %v266
    %v331 = vadd.f32 %v134, %v267
    %v332 = vadd.f32 %v135, %v268
    %v333 = vadd.f32 %v136, %v269
    %v334 = vadd.f32 %v137, %v270
    %v335 = vadd.f32 %v138, %v271
    %v336 = vadd.f32 %v139, %v272
    %v337 = vadd.f32 %v140, %v273
    %v338 = vadd.f32 %v141, %v274
    %v339 = vadd.f32 %v142, %v275
    %v340 = vadd.f32 %v143, %v276
    %v341 = vadd.f32 %v144, %v277
    %v342 = vadd.f32 %v145, %v278
    %v343 = vadd.f32 %v146, %v279
    %v344 = vadd.f32 %v147, %v280
    %v345 = vadd.f32 %v148, %v281
    %v346 = vadd.f32 %v149, %v282
    %v347 = vadd.f32 %v150, %v283
    %v348 = vadd.f32 %v151, %v284
    %v349 = vadd.f32 %v152, %v285
    %v350 = vadd.f32 %v153, %v286
    %v351 = vadd.f32 %v154, %v287
    %v352 = vadd.f32 %v155, %v288
    %v353 = vadd.f32 %v156, %v289
    %v354 = vadd.f32 %v157, %v290
    %v355 = vadd.f32 %v158, %v291
    %v356 = vadd.f32 %v159, %v292
    %v357 = vadd.f32 %v160, %v293
    %v358 = vadd.f32 %v161, %v294
    %v359 = vadd.f32 %v162, %v295
    %v360 = vadd.f32 %v163, %v296
    %v361 = vadd.f32 %v164, %v297
    %v362 = vadd.f32 %v165, %v298
    %v363 = vadd.f32 %v166, %v299
    %v364 = vadd.f32 %v167, %v300
    %v365 = vadd.f32 %v168, %v301
    %v366 = vadd.f32 %v169, %v302
    %v367 = vadd.f32 %v170, %v303
    %v368 = vadd.f32 %v171, %v304
    %v369 = vadd.f32 %v172, %v305
    %v370 = vadd.f32 %v173, %v306
    %v371 = vadd.f32 %v174, %v307
    %v372 = vadd.f32 %v175, %v308
    %v373 = vadd.f32 %v176, %v309
    %v374 = vadd.f32 %v177, %v310
    %s375 = scalar_lea.vmem %s0, 32
    %v376 = vld [vmem:[%s375] sm:$0xff]
    %v377 = vld [vmem:[%s375 + $0x8] sm:$0xff]
    %v380 = vrot.slane %v377, 7
    %v381 = vsel %vm39, %v376, %v380
    %v382 = vsel %vm41, %v376, %v380
    %v383 = vrot.slane %v382, 1
    %v384 = vsel %vm44, %v376, %v380
    %v385 = vrot.slane %v384, 2
    %v386 = vsel %vm47, %v376, %v380
    %v387 = vrot.slane %v386, 3
    %v388 = vsel %vm50, %v376, %v380
    %v389 = vrot.slane %v388, 4
    %v390 = vsel %vm53, %v376, %v380
    %v391 = vrot.slane %v390, 5
    %v392 = vsel %vm56, %v376, %v380
    %v393 = vrot.slane %v392, 6
    %v394 = vsel %vm59, %v380, %v376
    %v395 = vrot.slane %v394, 7
    %396 = vset.pattern.permute.xlu0 2
    %397 = vperm.xlu0 %396, %v30
    %v398 = vpop.permute.xlu0 %397
    %400 = vset.pattern.permute.xlu0 2
    %401 = vperm.xlu0 %400, %v31
    %v402 = vpop.permute.xlu0 %401
    %404 = vset.pattern.permute.xlu0 2
    %405 = vperm.xlu0 %404, %v32
    %v406 = vpop.permute.xlu0 %405
    %408 = vset.pattern.permute.xlu0 2
    %409 = vperm.xlu0 %408, %v33
    %v410 = vpop.permute.xlu0 %409
    %v412 = vperm.slane %v381, 0
    %v413 = vperm.slane %v381, 1
    %v414 = vperm.slane %v383, 0
    %v415 = vperm.slane %v383, 1
    %v416 = vperm.slane %v385, 0
    %v417 = vperm.slane %v385, 1
    %v418 = vperm.slane %v387, 0
    %v419 = vperm.slane %v387, 1
    %v420 = vperm.slane %v389, 0
    %v421 = vperm.slane %v389, 1
    %v422 = vperm.slane %v391, 0
    %v423 = vperm.slane %v391, 1
    %v424 = vperm.slane %v393, 0
    %v425 = vperm.slane %v393, 1
    %v426 = vperm.slane %v395, 0
    %v427 = vperm.slane %v395, 1
    %v444 = vmul.f32 %v398, %v412
    %v445 = vmul.f32 %v398, %v413
    %v446 = vmul.f32 %v402, %v412
    %v447 = vmul.f32 %v402, %v413
    %v448 = vmul.f32 %v406, %v412
    %v449 = vmul.f32 %v406, %v413
    %v450 = vmul.f32 %v410, %v412
    %v451 = vmul.f32 %v410, %v413
    %v452 = vmul.f32 %v398, %v414
    %v453 = vmul.f32 %v398, %v415
    %v454 = vmul.f32 %v402, %v414
    %v455 = vmul.f32 %v402, %v415
    %v456 = vmul.f32 %v406, %v414
    %v457 = vmul.f32 %v406, %v415
    %v458 = vmul.f32 %v410, %v414
    %v459 = vmul.f32 %v410, %v415
    %v460 = vmul.f32 %v398, %v416
    %v461 = vmul.f32 %v398, %v417
    %v462 = vmul.f32 %v402, %v416
    %v463 = vmul.f32 %v402, %v417
    %v464 = vmul.f32 %v406, %v416
    %v465 = vmul.f32 %v406, %v417
    %v466 = vmul.f32 %v410, %v416
    %v467 = vmul.f32 %v410, %v417
    %v468 = vmul.f32 %v398, %v418
    %v469 = vmul.f32 %v398, %v419
    %v470 = vmul.f32 %v402, %v418
    %v471 = vmul.f32 %v402, %v419
    %v472 = vmul.f32 %v406, %v418
    %v473 = vmul.f32 %v406, %v419
    %v474 = vmul.f32 %v410, %v418
    %v475 = vmul.f32 %v410, %v419
    %v476 = vmul.f32 %v398, %v420
    %v477 = vmul.f32 %v398, %v421
    %v478 = vmul.f32 %v402, %v420
    %v479 = vmul.f32 %v402, %v421
    %v480 = vmul.f32 %v406, %v420
    %v481 = vmul.f32 %v406, %v421
    %v482 = vmul.f32 %v410, %v420
    %v483 = vmul.f32 %v410, %v421
    %v484 = vmul.f32 %v398, %v422
    %v485 = vmul.f32 %v398, %v423
    %v486 = vmul.f32 %v402, %v422
    %v487 = vmul.f32 %v402, %v423
    %v488 = vmul.f32 %v406, %v422
    %v489 = vmul.f32 %v406, %v423
    %v490 = vmul.f32 %v410, %v422
    %v491 = vmul.f32 %v410, %v423
    %v492 = vmul.f32 %v398, %v424
    %v493 = vmul.f32 %v398, %v425
    %v494 = vmul.f32 %v402, %v424
    %v495 = vmul.f32 %v402, %v425
    %v496 = vmul.f32 %v406, %v424
    %v497 = vmul.f32 %v406, %v425
    %v498 = vmul.f32 %v410, %v424
    %v499 = vmul.f32 %v410, %v425
    %v500 = vmul.f32 %v398, %v426
    %v501 = vmul.f32 %v398, %v427
    %v502 = vmul.f32 %v402, %v426
    %v503 = vmul.f32 %v402, %v427
    %v504 = vmul.f32 %v406, %v426
    %v505 = vmul.f32 %v406, %v427
    %v506 = vmul.f32 %v410, %v426
    %v507 = vmul.f32 %v410, %v427
    %v508 = vadd.f32 %v311, %v444
    %v509 = vadd.f32 %v312, %v445
    %v510 = vadd.f32 %v313, %v446
    %v511 = vadd.f32 %v314, %v447
    %v512 = vadd.f32 %v315, %v448
    %v513 = vadd.f32 %v316, %v449
    %v514 = vadd.f32 %v317, %v450
    %v515 = vadd.f32 %v318, %v451
    %v516 = vadd.f32 %v319, %v452
    %v517 = vadd.f32 %v320, %v453
    %v518 = vadd.f32 %v321, %v454
    %v519 = vadd.f32 %v322, %v455
    %v520 = vadd.f32 %v323, %v456
    %v521 = vadd.f32 %v324, %v457
    %v522 = vadd.f32 %v325, %v458
    %v523 = vadd.f32 %v326, %v459
    %v524 = vadd.f32 %v327, %v460
    %v525 = vadd.f32 %v328, %v461
    %v526 = vadd.f32 %v329, %v462
    %v527 = vadd.f32 %v330, %v463
    %v528 = vadd.f32 %v331, %v464
    %v529 = vadd.f32 %v332, %v465
    %v530 = vadd.f32 %v333, %v466
    %v531 = vadd.f32 %v334, %v467
    %v532 = vadd.f32 %v335, %v468
    %v533 = vadd.f32 %v336, %v469
    %v534 = vadd.f32 %v337, %v470
    %v535 = vadd.f32 %v338, %v471
    %v536 = vadd.f32 %v339, %v472
    %v537 = vadd.f32 %v340, %v473
    %v538 = vadd.f32 %v341, %v474
    %v539 = vadd.f32 %v342, %v475
    %v540 = vadd.f32 %v343, %v476
    %v541 = vadd.f32 %v344, %v477
    %v542 = vadd.f32 %v345, %v478
    %v543 = vadd.f32 %v346, %v479
    %v544 = vadd.f32 %v347, %v480
    %v545 = vadd.f32 %v348, %v481
    %v546 = vadd.f32 %v349, %v482
    %v547 = vadd.f32 %v350, %v483
    %v548 = vadd.f32 %v351, %v484
    %v549 = vadd.f32 %v352, %v485
    %v550 = vadd.f32 %v353, %v486
    %v551 = vadd.f32 %v354, %v487
    %v552 = vadd.f32 %v355, %v488
    %v553 = vadd.f32 %v356, %v489
    %v554 = vadd.f32 %v357, %v490
    %v555 = vadd.f32 %v358, %v491
    %v556 = vadd.f32 %v359, %v492
    %v557 = vadd.f32 %v360, %v493
    %v558 = vadd.f32 %v361, %v494
    %v559 = vadd.f32 %v362, %v495
    %v560 = vadd.f32 %v363, %v496
    %v561 = vadd.f32 %v364, %v497
    %v562 = vadd.f32 %v365, %v498
    %v563 = vadd.f32 %v366, %v499
    %v564 = vadd.f32 %v367, %v500
    %v565 = vadd.f32 %v368, %v501
    %v566 = vadd.f32 %v369, %v502
    %v567 = vadd.f32 %v370, %v503
    %v568 = vadd.f32 %v371, %v504
    %v569 = vadd.f32 %v372, %v505
    %v570 = vadd.f32 %v373, %v506
    %v571 = vadd.f32 %v374, %v507
    %v572 = vld [vmem:[%s2] sm:$0xff]
    %v573 = vld [vmem:[%s2 + $0x8] sm:$0xff]
    %v574 = vld [vmem:[%s2 + $0x10] sm:$0xff]
    %v575 = vld [vmem:[%s2 + $0x18] sm:$0xff]
    %577 = vset.pattern.permute.xlu0 0
    %578 = vperm.xlu0 %577, %v572
    %v579 = vpop.permute.xlu0 %578
    %582 = vset.pattern.permute.xlu0 0
    %583 = vperm.xlu0 %582, %v573
    %v584 = vpop.permute.xlu0 %583
    %587 = vset.pattern.permute.xlu0 0
    %588 = vperm.xlu0 %587, %v574
    %v589 = vpop.permute.xlu0 %588
    %592 = vset.pattern.permute.xlu0 0
    %593 = vperm.xlu0 %592, %v575
    %v594 = vpop.permute.xlu0 %593
    %v596 = vadd.f32 %v508, %v579
    %v597 = vadd.f32 %v509, %v579
    %v598 = vadd.f32 %v510, %v584
    %v599 = vadd.f32 %v511, %v584
    %v600 = vadd.f32 %v512, %v589
    %v601 = vadd.f32 %v513, %v589
    %v602 = vadd.f32 %v514, %v594
    %v603 = vadd.f32 %v515, %v594
    %v604 = vadd.f32 %v516, %v579
    %v605 = vadd.f32 %v517, %v579
    %v606 = vadd.f32 %v518, %v584
    %v607 = vadd.f32 %v519, %v584
    %v608 = vadd.f32 %v520, %v589
    %v609 = vadd.f32 %v521, %v589
    %v610 = vadd.f32 %v522, %v594
    %v611 = vadd.f32 %v523, %v594
    %v612 = vadd.f32 %v524, %v579
    %v613 = vadd.f32 %v525, %v579
    %v614 = vadd.f32 %v526, %v584
    %v615 = vadd.f32 %v527, %v584
    %v616 = vadd.f32 %v528, %v589
    %v617 = vadd.f32 %v529, %v589
    %v618 = vadd.f32 %v530, %v594
    %v619 = vadd.f32 %v531, %v594
    %v620 = vadd.f32 %v532, %v579
    %v621 = vadd.f32 %v533, %v579
    %v622 = vadd.f32 %v534, %v584
    %v623 = vadd.f32 %v535, %v584
    %v624 = vadd.f32 %v536, %v589
    %v625 = vadd.f32 %v537, %v589
    %v626 = vadd.f32 %v538, %v594
    %v627 = vadd.f32 %v539, %v594
    %v628 = vadd.f32 %v540, %v579
    %v629 = vadd.f32 %v541, %v579
    %v630 = vadd.f32 %v542, %v584
    %v631 = vadd.f32 %v543, %v584
    %v632 = vadd.f32 %v544, %v589
    %v633 = vadd.f32 %v545, %v589
    %v634 = vadd.f32 %v546, %v594
    %v635 = vadd.f32 %v547, %v594
    %v636 = vadd.f32 %v548, %v579
    %v637 = vadd.f32 %v549, %v579
    %v638 = vadd.f32 %v550, %v584
    %v639 = vadd.f32 %v551, %v584
    %v640 = vadd.f32 %v552, %v589
    %v641 = vadd.f32 %v553, %v589
    %v642 = vadd.f32 %v554, %v594
    %v643 = vadd.f32 %v555, %v594
    %v644 = vadd.f32 %v556, %v579
    %v645 = vadd.f32 %v557, %v579
    %v646 = vadd.f32 %v558, %v584
    %v647 = vadd.f32 %v559, %v584
    %v648 = vadd.f32 %v560, %v589
    %v649 = vadd.f32 %v561, %v589
    %v650 = vadd.f32 %v562, %v594
    %v651 = vadd.f32 %v563, %v594
    %v652 = vadd.f32 %v564, %v579
    %v653 = vadd.f32 %v565, %v579
    %v654 = vadd.f32 %v566, %v584
    %v655 = vadd.f32 %v567, %v584
    %v656 = vadd.f32 %v568, %v589
    %v657 = vadd.f32 %v569, %v589
    %v658 = vadd.f32 %v570, %v594
    %v659 = vadd.f32 %v571, %v594
    %v660 = vmax.f32 %v596, 0.0
    %v661 = vmax.f32 %v597, 0.0
    %v662 = vmax.f32 %v598, 0.0
    %v663 = vmax.f32 %v599, 0.0
    %v664 = vmax.f32 %v600, 0.0
    %v665 = vmax.f32 %v601, 0.0
    %v666 = vmax.f32 %v602, 0.0
    %v667 = vmax.f32 %v603, 0.0
    %v668 = vmax.f32 %v604, 0.0
    %v669 = vmax.f32 %v605, 0.0
    %v670 = vmax.f32 %v606, 0.0
    %v671 = vmax.f32 %v607, 0.0
    %v672 = vmax.f32 %v608, 0.0
    %v673 = vmax.f32 %v609, 0.0
    %v674 = vmax.f32 %v610, 0.0
    %v675 = vmax.f32 %v611, 0.0
    %v676 = vmax.f32 %v612, 0.0
    %v677 = vmax.f32 %v613, 0.0
    %v678 = vmax.f32 %v614, 0.0
    %v679 = vmax.f32 %v615, 0.0
    %v680 = vmax.f32 %v616, 0.0
    %v681 = vmax.f32 %v617, 0.0
    %v682 = vmax.f32 %v618, 0.0
    %v683 = vmax.f32 %v619, 0.0
    %v684 = vmax.f32 %v620, 0.0
    %v685 = vmax.f32 %v621, 0.0
    %v686 = vmax.f32 %v622, 0.0
    %v687 = vmax.f32 %v623, 0.0
    %v688 = vmax.f32 %v624, 0.0
    %v689 = vmax.f32 %v625, 0.0
    %v690 = vmax.f32 %v626, 0.0
    %v691 = vmax.f32 %v627, 0.0
    %v692 = vmax.f32 %v628, 0.0
    %v693 = vmax.f32 %v629, 0.0
    %v694 = vmax.f32 %v630, 0.0
    %v695 = vmax.f32 %v631, 0.0
    %v696 = vmax.f32 %v632, 0.0
    %v697 = vmax.f32 %v633, 0.0
    %v698 = vmax.f32 %v634, 0.0
    %v699 = vmax.f32 %v635, 0.0
    %v700 = vmax.f32 %v636, 0.0
    %v701 = vmax.f32 %v637, 0.0
    %v702 = vmax.f32 %v638, 0.0
    %v703 = vmax.f32 %v639, 0.0
    %v704 = vmax.f32 %v640, 0.0
    %v705 = vmax.f32 %v641, 0.0
    %v706 = vmax.f32 %v642, 0.0
    %v707 = vmax.f32 %v643, 0.0
    %v708 = vmax.f32 %v644, 0.0
    %v709 = vmax.f32 %v645, 0.0
    %v710 = vmax.f32 %v646, 0.0
    %v711 = vmax.f32 %v647, 0.0
    %v712 = vmax.f32 %v648, 0.0
    %v713 = vmax.f32 %v649, 0.0
    %v714 = vmax.f32 %v650, 0.0
    %v715 = vmax.f32 %v651, 0.0
    %v716 = vmax.f32 %v652, 0.0
    %v717 = vmax.f32 %v653, 0.0
    %v718 = vmax.f32 %v654, 0.0
    %v719 = vmax.f32 %v655, 0.0
    %v720 = vmax.f32 %v656, 0.0
    %v721 = vmax.f32 %v657, 0.0
    %v722 = vmax.f32 %v658, 0.0
    %v723 = vmax.f32 %v659, 0.0
    %v724 = vadd.f32 %v660, %v661
    %725 = vadd.xlane.f32.xlu0 %v724
    %v726 = vpop.xlane.xlu0 %725
    %v727 = vadd.f32 %v662, %v663
    %728 = vadd.xlane.f32.xlu0 %v727
    %v729 = vpop.xlane.xlu0 %728
    %v730 = vadd.f32 %v664, %v665
    %731 = vadd.xlane.f32.xlu0 %v730
    %v732 = vpop.xlane.xlu0 %731
    %v733 = vadd.f32 %v666, %v667
    %734 = vadd.xlane.f32.xlu0 %v733
    %v735 = vpop.xlane.xlu0 %734
    %v736 = vadd.f32 %v668, %v669
    %737 = vadd.xlane.f32.xlu0 %v736
    %v738 = vpop.xlane.xlu0 %737
    %v739 = vadd.f32 %v670, %v671
    %740 = vadd.xlane.f32.xlu0 %v739
    %v741 = vpop.xlane.xlu0 %740
    %v742 = vadd.f32 %v672, %v673
    %743 = vadd.xlane.f32.xlu0 %v742
    %v744 = vpop.xlane.xlu0 %743
    %v745 = vadd.f32 %v674, %v675
    %746 = vadd.xlane.f32.xlu0 %v745
    %v747 = vpop.xlane.xlu0 %746
    %v748 = vadd.f32 %v676, %v677
    %749 = vadd.xlane.f32.xlu0 %v748
    %v750 = vpop.xlane.xlu0 %749
    %v751 = vadd.f32 %v678, %v679
    %752 = vadd.xlane.f32.xlu0 %v751
    %v753 = vpop.xlane.xlu0 %752
    %v754 = vadd.f32 %v680, %v681
    %755 = vadd.xlane.f32.xlu0 %v754
    %v756 = vpop.xlane.xlu0 %755
    %v757 = vadd.f32 %v682, %v683
    %758 = vadd.xlane.f32.xlu0 %v757
    %v759 = vpop.xlane.xlu0 %758
    %v760 = vadd.f32 %v684, %v685
    %761 = vadd.xlane.f32.xlu0 %v760
    %v762 = vpop.xlane.xlu0 %761
    %v763 = vadd.f32 %v686, %v687
    %764 = vadd.xlane.f32.xlu0 %v763
    %v765 = vpop.xlane.xlu0 %764
    %v766 = vadd.f32 %v688, %v689
    %767 = vadd.xlane.f32.xlu0 %v766
    %v768 = vpop.xlane.xlu0 %767
    %v769 = vadd.f32 %v690, %v691
    %770 = vadd.xlane.f32.xlu0 %v769
    %v771 = vpop.xlane.xlu0 %770
    %v772 = vadd.f32 %v692, %v693
    %773 = vadd.xlane.f32.xlu0 %v772
    %v774 = vpop.xlane.xlu0 %773
    %v775 = vadd.f32 %v694, %v695
    %776 = vadd.xlane.f32.xlu0 %v775
    %v777 = vpop.xlane.xlu0 %776
    %v778 = vadd.f32 %v696, %v697
    %779 = vadd.xlane.f32.xlu0 %v778
    %v780 = vpop.xlane.xlu0 %779
    %v781 = vadd.f32 %v698, %v699
    %782 = vadd.xlane.f32.xlu0 %v781
    %v783 = vpop.xlane.xlu0 %782
    %v784 = vadd.f32 %v700, %v701
    %785 = vadd.xlane.f32.xlu0 %v784
    %v786 = vpop.xlane.xlu0 %785
    %v787 = vadd.f32 %v702, %v703
    %788 = vadd.xlane.f32.xlu0 %v787
    %v789 = vpop.xlane.xlu0 %788
    %v790 = vadd.f32 %v704, %v705
    %791 = vadd.xlane.f32.xlu0 %v790
    %v792 = vpop.xlane.xlu0 %791
    %v793 = vadd.f32 %v706, %v707
    %794 = vadd.xlane.f32.xlu0 %v793
    %v795 = vpop.xlane.xlu0 %794
    %v796 = vadd.f32 %v708, %v709
    %797 = vadd.xlane.f32.xlu0 %v796
    %v798 = vpop.xlane.xlu0 %797
    %v799 = vadd.f32 %v710, %v711
    %800 = vadd.xlane.f32.xlu0 %v799
    %v801 = vpop.xlane.xlu0 %800
    %v802 = vadd.f32 %v712, %v713
    %803 = vadd.xlane.f32.xlu0 %v802
    %v804 = vpop.xlane.xlu0 %803
    %v805 = vadd.f32 %v714, %v715
    %806 = vadd.xlane.f32.xlu0 %v805
    %v807 = vpop.xlane.xlu0 %806
    %v808 = vadd.f32 %v716, %v717
    %809 = vadd.xlane.f32.xlu0 %v808
    %v810 = vpop.xlane.xlu0 %809
    %v811 = vadd.f32 %v718, %v719
    %812 = vadd.xlane.f32.xlu0 %v811
    %v813 = vpop.xlane.xlu0 %812
    %v814 = vadd.f32 %v720, %v721
    %815 = vadd.xlane.f32.xlu0 %v814
    %v816 = vpop.xlane.xlu0 %815
    %v817 = vadd.f32 %v722, %v723
    %818 = vadd.xlane.f32.xlu0 %v817
    %v819 = vpop.xlane.xlu0 %818
    %v820 = vrcp.pop 256.0
    %v821 = vmul.f32 256.0, %v820
    %v822 = vsub.f32 1.0, %v821
    %v823 = vmul.f32 %v820, %v822
    %v824 = vadd.f32 %v820, %v823
    %vm825 = vweird.f32 %v820
    %v826 = vsel %vm825, %v820, %v824
    %v827 = vmul.f32 %v726, %v826
    %v828 = vmul.f32 %v729, %v826
    %v829 = vmul.f32 %v732, %v826
    %v830 = vmul.f32 %v735, %v826
    %v831 = vmul.f32 %v738, %v826
    %v832 = vmul.f32 %v741, %v826
    %v833 = vmul.f32 %v744, %v826
    %v834 = vmul.f32 %v747, %v826
    %v835 = vmul.f32 %v750, %v826
    %v836 = vmul.f32 %v753, %v826
    %v837 = vmul.f32 %v756, %v826
    %v838 = vmul.f32 %v759, %v826
    %v839 = vmul.f32 %v762, %v826
    %v840 = vmul.f32 %v765, %v826
    %v841 = vmul.f32 %v768, %v826
    %v842 = vmul.f32 %v771, %v826
    %v843 = vmul.f32 %v774, %v826
    %v844 = vmul.f32 %v777, %v826
    %v845 = vmul.f32 %v780, %v826
    %v846 = vmul.f32 %v783, %v826
    %v847 = vmul.f32 %v786, %v826
    %v848 = vmul.f32 %v789, %v826
    %v849 = vmul.f32 %v792, %v826
    %v850 = vmul.f32 %v795, %v826
    %v851 = vmul.f32 %v798, %v826
    %v852 = vmul.f32 %v801, %v826
    %v853 = vmul.f32 %v804, %v826
    %v854 = vmul.f32 %v807, %v826
    %v855 = vmul.f32 %v810, %v826
    %v856 = vmul.f32 %v813, %v826
    %v857 = vmul.f32 %v816, %v826
    %v858 = vmul.f32 %v819, %v826
    %v859 = vld [vmem:[%s3] sm:$0xff]
    %v860 = vld [vmem:[%s3 + $0x8] sm:$0xff]
    %v861 = vld [vmem:[%s3 + $0x10] sm:$0xff]
    %v862 = vld [vmem:[%s3 + $0x18] sm:$0xff]
    %v863 = vld [vmem:[%s4] sm:$0x1]
    %v865 = vperm.slane %v863, 0
    %v899 = vlaneseq
    %v900 = vand.u32 %v899, 127
    %v901 = vperm.slane %v827, %v900
    %v902 = vadd.s32 %v900, 4294967288
    %v903 = vperm.slane %v828, %v902
    %vm904 = vcmask 130112
    %v905 = vsel %vm904, %v903, %v901
    %v906 = vadd.s32 %v900, 4294967280
    %v907 = vperm.slane %v829, %v906
    %vm908 = vcmask 195712
    %v909 = vsel %vm908, %v907, %v905
    %v910 = vadd.s32 %v900, 4294967272
    %v911 = vperm.slane %v830, %v910
    %vm912 = vcmask 261312
    %v913 = vsel %vm912, %v911, %v909
    %v914 = vperm.slane %v831, %v900
    %v915 = vperm.slane %v832, %v902
    %v916 = vsel %vm904, %v915, %v914
    %v917 = vperm.slane %v833, %v906
    %v918 = vsel %vm908, %v917, %v916
    %v919 = vperm.slane %v834, %v910
    %v920 = vsel %vm912, %v919, %v918
    %v921 = vperm.slane %v835, %v900
    %v922 = vperm.slane %v836, %v902
    %v923 = vsel %vm904, %v922, %v921
    %v924 = vperm.slane %v837, %v906
    %v925 = vsel %vm908, %v924, %v923
    %v926 = vperm.slane %v838, %v910
    %v927 = vsel %vm912, %v926, %v925
    %v928 = vperm.slane %v839, %v900
    %v929 = vperm.slane %v840, %v902
    %v930 = vsel %vm904, %v929, %v928
    %v931 = vperm.slane %v841, %v906
    %v932 = vsel %vm908, %v931, %v930
    %v933 = vperm.slane %v842, %v910
    %v934 = vsel %vm912, %v933, %v932
    %v935 = vperm.slane %v843, %v900
    %v936 = vperm.slane %v844, %v902
    %v937 = vsel %vm904, %v936, %v935
    %v938 = vperm.slane %v845, %v906
    %v939 = vsel %vm908, %v938, %v937
    %v940 = vperm.slane %v846, %v910
    %v941 = vsel %vm912, %v940, %v939
    %v942 = vperm.slane %v847, %v900
    %v943 = vperm.slane %v848, %v902
    %v944 = vsel %vm904, %v943, %v942
    %v945 = vperm.slane %v849, %v906
    %v946 = vsel %vm908, %v945, %v944
    %v947 = vperm.slane %v850, %v910
    %v948 = vsel %vm912, %v947, %v946
    %v949 = vperm.slane %v851, %v900
    %v950 = vperm.slane %v852, %v902
    %v951 = vsel %vm904, %v950, %v949
    %v952 = vperm.slane %v853, %v906
    %v953 = vsel %vm908, %v952, %v951
    %v954 = vperm.slane %v854, %v910
    %v955 = vsel %vm912, %v954, %v953
    %v956 = vperm.slane %v855, %v900
    %v957 = vperm.slane %v856, %v902
    %v958 = vsel %vm904, %v957, %v956
    %v959 = vperm.slane %v857, %v906
    %v960 = vsel %vm908, %v959, %v958
    %v961 = vperm.slane %v858, %v910
    %v962 = vsel %vm912, %v961, %v960
    %v963 = vsel %vm41, %v920, %v913
    %v964 = vsel %vm44, %v927, %v963
    %v965 = vsel %vm47, %v934, %v964
    %v966 = vsel %vm50, %v941, %v965
    %v967 = vsel %vm53, %v948, %v966
    %v968 = vsel %vm56, %v955, %v967
    %vm969 = vcmask 1047559
    %v970 = vsel %vm969, %v962, %v968
    %vm971 = vcmask 261120
    %v972 = vsel %vm971, %v970, 0
    %974 = vmatpush.msra.mxu0 0.0
    %975 = vmatpush.msra.mxu0 0.0
    %976 = vmatpush.msra.mxu0 0.0
    %977 = vmatpush.msra.mxu0 0.0
    %978 = vmatpush.msra.mxu0 0.0
    %979 = vmatpush.msra.mxu0 0.0
    %980 = vmatpush.msra.mxu0 0.0
    %981 = vmatpush.msra.mxu0 0.0
    %982 = vmatpush.msra.mxu0 0.0
    %983 = vmatpush.msra.mxu0 0.0
    %984 = vmatpush.msra.mxu0 0.0
    %985 = vmatpush.msra.mxu0 0.0
    %986 = vmatpush.msra.mxu0 %v862
    %987 = vmatpush.msra.mxu0 %v861
    %988 = vmatpush.msra.mxu0 %v860
    %989 = vmatpush.msra.mxu0 %v859
    %990 = vmatmul.f32.gmra.mxu0 %v972
    %v991 = vpop.f32.mrf.mxu0
    %v992 = vadd.f32 %v865, %v991
    %993 = vdwg.mxu0
    %v994 = vmax.f32 %v992, 0.0
    %v995 = vld [vmem:[%s7] sm:$0x3]
    %vm996 = vcmask 64512
    %v998 = vsel %vm996, %v995, 0
    %1000 = vmatpush.msra.mxu0 0.0
    %1001 = vmatpush.msra.mxu0 0.0
    %1002 = vmatpush.msra.mxu0 0.0
    %1003 = vmatpush.msra.mxu0 0.0
    %1004 = vmatpush.msra.mxu0 0.0
    %1005 = vmatpush.msra.mxu0 0.0
    %1006 = vmatpush.msra.mxu0 0.0
    %1007 = vmatpush.msra.mxu0 0.0
    %1008 = vmatpush.msra.mxu0 0.0
    %1009 = vmatpush.msra.mxu0 0.0
    %1010 = vmatpush.msra.mxu0 0.0
    %1011 = vmatpush.msra.mxu0 0.0
    %1012 = vmatpush.msra.mxu0 0.0
    %1013 = vmatpush.msra.mxu0 0.0
    %1014 = vmatpush.msra.mxu0 0.0
    %1015 = vmatpush.msra.mxu0 %v994
    %1016 = vmatmul.f32.gmra.mxu0 %v998
    %v1017 = vpop.f32.mrf.mxu0
    %v1018 = vadd.f32 0.0, %v1017
    %1019 = vdwg.mxu0
    %v1020 = vld [vmem:[%s5] sm:$0xff]
    %v1021 = vld [vmem:[%s5 + $0x8] sm:$0xff]
    %v1022 = vld [vmem:[%s5 + $0x10] sm:$0xff]
    %v1023 = vld [vmem:[%s5 + $0x18] sm:$0xff]
    %v1024 = vld [vmem:[%s6] sm:$0x1]
    %v1026 = vperm.slane %v1024, 0
    %v1029 = vsel %vm971, %v1018, 0
    %1031 = vmatpush.msra.mxu0 0.0
    %1032 = vmatpush.msra.mxu0 0.0
    %1033 = vmatpush.msra.mxu0 0.0
    %1034 = vmatpush.msra.mxu0 0.0
    %1035 = vmatpush.msra.mxu0 0.0
    %1036 = vmatpush.msra.mxu0 0.0
    %1037 = vmatpush.msra.mxu0 0.0
    %1038 = vmatpush.msra.mxu0 0.0
    %1039 = vmatpush.msra.mxu0 0.0
    %1040 = vmatpush.msra.mxu0 0.0
    %1041 = vmatpush.msra.mxu0 0.0
    %1042 = vmatpush.msra.mxu0 0.0
    %1043 = vmatpush.msra.mxu0 %v1023
    %1044 = vmatpush.msra.mxu0 %v1022
    %1045 = vmatpush.msra.mxu0 %v1021
    %1046 = vmatpush.msra.mxu0 %v1020
    %1047 = vmatmul.f32.gmra.mxu0 %v1029
    %v1048 = vpop.f32.mrf.mxu0
    %v1049 = vadd.f32 %v1026, %v1048
    %1050 = vdwg.mxu0
    %vm1051 = vcmask 74752
    %1052 = vst.msk [vmem:[#allocation2] sm:$0x3] %vm1051, %v1049
    // Predicated region
    $region34: #{tpu_custom_call.1} parent=1 // pred_check
      _
    $region35: #{tpu_custom_call.1} parent=1 // pred_check_branch
      %1054 = sbr.rel (0) target = $region37
    $region36: #{tpu_custom_call.1} parent=1 // pred_region
      %1056 = vsyncadd [#allocation3], 0
      %s1058 = sshll.u32 [#allocation2], 4
      %s1059 = int_to_ptr.vmem [resolvable:$true] %s1058
      %s1060 = sshll.u32 %s8, 4
      %s1061 = int_to_ptr.hbm [resolvable:$true] %s1060
      %1063 = dma.vmem_to_hbm [thread:$0]  %s1059, 32, %s1061, [#allocation3]
    $region37: #{tpu_custom_call.1} parent=1 // pred_fallthru
      _
    // Predicated region
    $region38: #{tpu_custom_call.1} parent=1 // pred_check
      _
    $region39: #{tpu_custom_call.1} parent=1 // pred_check_branch
      %1065 = sbr.rel (0) target = $region41
    $region40: #{tpu_custom_call.1} parent=1 // pred_region
      %1067 = dma.done [#allocation3], 32
    $region41: #{tpu_custom_call.1} parent=1 // pred_fallthru
      _
    %1068 = vsyncpa [#allocation3], 1

</llo_original>
